<compile_context>
chip_gen: v5e
topology: v5e:2x2
jax: 0.10.0
libtpu: 0.0.40
codegen_flags: <defaults>
</compile_context>

<pallas_src>
import functools

import jax
import jax.numpy as jnp
from jax.experimental import pallas as pl
from jax.experimental.pallas import tpu as pltpu


def _round_up(x, m):
    return ((x + m - 1) // m) * m


def _plan_tiles(batch, lt, li, d, t_item, i_item, seq_block, budget_bytes):
    """Pick (TB, TLt, TLi, S) from padded-VMEM-aware footprints."""
    d_pad = _round_up(d, 128)

    def footprint(tb, tlt, tli):
        # Pipelined VMEM bytes for one grid step, using padded tile dims:
        #   2x double-buffered input blocks + in-kernel f32 temporaries
        #   (cast/mask of each block) + the two (TB, D) f32 accumulators.
        tlt_p, tli_p = _round_up(tlt, 8), _round_up(tli, 8)
        inputs = tb * d_pad * (tlt_p * t_item + tli_p * i_item)
        f32_tmp = 4 * tb * d_pad * (tlt_p + tli_p)
        acc = 2 * 4 * _round_up(tb, 8) * d_pad
        return 2 * inputs + f32_tmp + acc

    # --- sequence tiling: one shared step count S for both inputs ----------
    tl_cap = max(8, seq_block) if seq_block is not None else 512
    while True:
        s_steps = max(pl.cdiv(lt, min(lt, tl_cap)), pl.cdiv(li, min(li, tl_cap)))
        # Per-input tile: full seq if it fits in one step, else a multiple of
        # 8 (the (8,128) sublane rule) covering ceil(L / S) positions.
        tlt = min(lt, _round_up(pl.cdiv(lt, s_steps), 8))
        tli = min(li, _round_up(pl.cdiv(li, s_steps), 8))
        if footprint(8, tlt, tli) <= budget_bytes or tl_cap <= 8:
            break
        tl_cap //= 2

    # --- batch tiling: largest multiple of 8 that fits the budget ----------
    tb_max = _round_up(batch, 8)
    if batch > 8:
        # Keep >= 2 batch blocks so the "parallel" axis can use both v7x TCs.
        tb_max = min(tb_max, _round_up(pl.cdiv(batch, 2), 8))
    per8 = max(1, footprint(8, tlt, tli))
    tb = (budget_bytes // per8) * 8
    tb = max(8, min(tb_max, tb))
    return tb, tlt, tli, s_steps


def _sym_consistency_kernel(t_ref, i_ref, o_ref, t_acc, i_acc, *,
                            batch, block_b, seq_t, seq_i, tile_t, tile_i,
                            mask_t, mask_i, eps2_t, eps2_i):
    """One (batch block, seq block) step.

    t_ref: (TB, TLt, D)  i_ref: (TB, TLi, D)  o_ref: (1, 1, 1)
    t_acc / i_acc: (TB, D) f32 scratch carried across the seq ("arbitrary")
    grid axis.
    """
    b = pl.program_id(0)
    s = pl.program_id(1)

    @pl.when(s == 0)
    def _():
        t_acc[...] = jnp.zeros_like(t_acc)
        i_acc[...] = jnp.zeros_like(i_acc)

    def accumulate(ref, acc, tile, seq_len, need_mask):
        x = ref[...].astype(jnp.float32)                       # (TB, TL, D)
        if need_mask:
            # Last seq block is padded (or a clamped re-read): zero those
            # positions so they never contaminate the seq-sum.
            pos = s * tile + jax.lax.broadcasted_iota(jnp.int32, (1, tile, 1), 1)
            x = jnp.where(pos < seq_len, x, 0.0)
        acc[...] += jnp.sum(x, axis=1)                         # (TB, D)

    # Sum (not mean) over the sequence: the 1/L scale cancels after L2
    # normalization (the eps clamp is rescaled below to match exactly).
    accumulate(t_ref, t_acc, tile_t, seq_t, mask_t)
    accumulate(i_ref, i_acc, tile_i, seq_i, mask_i)

    @pl.when(s == pl.num_programs(1) - 1)
    def _():
        ts, ims = t_acc[...], i_acc[...]
        dot = jnp.sum(ts * ims, axis=-1, keepdims=True)        # (TB, 1)
        nt2 = jnp.sum(ts * ts, axis=-1, keepdims=True)
        ni2 = jnp.sum(ims * ims, axis=-1, keepdims=True)
        # cosine(mean_t, mean_i) == cosine(sum_t, sum_i); F.normalize's 1e-12
        # clamp on the *mean*-norm is exactly a clamp at L*1e-12 on the
        # *sum*-norm.  rsqrt uses the EUP slot instead of full-width divides.
        inv = (jax.lax.rsqrt(jnp.maximum(nt2, eps2_t)) *
               jax.lax.rsqrt(jnp.maximum(ni2, eps2_i)))
        cosine = dot * inv                                     # (TB, 1)
        # Mask rows beyond the true batch (last block may hold garbage) and
        # emit one partial-sum scalar per batch block (tiny, lane-padding-free
        # output; the wrapper finishes the reduction).
        row = b * block_b + jax.lax.broadcasted_iota(jnp.int32, (block_b, 1), 0)
        valid = jnp.where(row < batch, cosine, 0.0)
        o_ref[0] = jnp.sum(valid, axis=0, keepdims=True)       # (1, 1)


def symmetric_consistency_loss(text_features, image_features,
                               distribution=None, cosine_sim=None,
                               temperature=0.07, *, seq_block=None,
                               vmem_budget_bytes=30 * 1024 * 1024):
    # temperature / distribution / cosine_sim are unused in the reference
    # forward pass; kept for API parity.
    del distribution, cosine_sim, temperature

    if text_features.ndim == 2:
        text_features = text_features[:, None, :]
    if image_features.ndim == 2:
        image_features = image_features[:, None, :]

    B, Lt, D = text_features.shape
    Bi, Li, Di = image_features.shape
    assert B == Bi and D == Di, "batch / feature dims must match"

    t_item = text_features.dtype.itemsize
    i_item = image_features.dtype.itemsize

    tb, tlt, tli, s_steps = _plan_tiles(B, Lt, Li, D, t_item, i_item,
                                        seq_block, vmem_budget_bytes)
    gb = pl.cdiv(B, tb)
    steps_t = pl.cdiv(Lt, tlt)
    steps_i = pl.cdiv(Li, tli)

    def seq_spec(tile, steps):
        if steps == s_steps:
            index_map = lambda bb, ss: (bb, ss, 0)
        else:
            # This input needs fewer seq steps than the shared grid provides:
            # clamp the block index; the extra (re-read) steps are fully
            # masked inside the kernel.
            last = steps - 1
            index_map = lambda bb, ss: (bb, jnp.minimum(ss, last), 0)
        return pl.BlockSpec((tb, tile, D), index_map)

    kernel = functools.partial(
        _sym_consistency_kernel,
        batch=B, block_b=tb, seq_t=Lt, seq_i=Li, tile_t=tlt, tile_i=tli,
        mask_t=(s_steps * tlt != Lt), mask_i=(s_steps * tli != Li),
        eps2_t=float((Lt * 1e-12) ** 2), eps2_i=float((Li * 1e-12) ** 2))

    cost = pl.CostEstimate(
        flops=int(2 * B * D * (Lt + Li + 6)),
        transcendentals=int(2 * B),
        bytes_accessed=int(B * D * (Lt * t_item + Li * i_item) + gb * 4))

    partials = pl.pallas_call(
        kernel,
        out_shape=jax.ShapeDtypeStruct((gb, 1, 1), jnp.float32),
        grid=(gb, s_steps),
        in_specs=[seq_spec(tlt, steps_t), seq_spec(tli, steps_i)],
        out_specs=pl.BlockSpec((1, 1, 1), lambda bb, ss: (bb, 0, 0)),
        scratch_shapes=[pltpu.VMEM((tb, D), jnp.float32),
                        pltpu.VMEM((tb, D), jnp.float32)],
        compiler_params=pltpu.CompilerParams(
            dimension_semantics=("parallel", "arbitrary"),
            vmem_limit_bytes=48 * 1024 * 1024),
        cost_estimate=cost,
    )(text_features, image_features)

    # Final reduction over gb partial sums is negligible; keeping it in the
    # wrapper leaves the batch grid axis fully parallel (both TCs on v7x).
    return 1.0 - jnp.sum(partials) / jnp.float32(B)


def _reference_loss(text_features, image_features):
    """Pure-JAX reference mirroring the PyTorch module."""
    if text_features.ndim > 2:
        text_features = jnp.mean(text_features, axis=1)
    if image_features.ndim > 2:
        image_features = jnp.mean(image_features, axis=1)
    eps = 1e-12
    t = text_features / jnp.maximum(
        jnp.linalg.norm(text_features, axis=-1, keepdims=True), eps)
    i = image_features / jnp.maximum(
        jnp.linalg.norm(image_features, axis=-1, keepdims=True), eps)
    cosine = jnp.sum(t * i, axis=-1)
    return 1.0 - jnp.mean(cosine)


if __name__ == "__main__":
    key = jax.random.PRNGKey(0)
    keys = jax.random.split(key, 8)

    # Main case: (batch, seq, hidden) = (2, 8, 32).
    tf = jax.random.normal(keys[0], (2, 8, 32), dtype=jnp.float32)
    imf = jax.random.normal(keys[1], (2, 8, 32), dtype=jnp.float32)
    loss = jax.block_until_ready(symmetric_consistency_loss(tf, imf))
    ref = _reference_loss(tf, imf)
    assert jnp.allclose(loss, ref, atol=1e-5, rtol=1e-5), (loss, ref)

    # Batch not a multiple of the tile + different seq lengths per modality.
    tf2 = jax.random.normal(keys[2], (5, 3, 32), dtype=jnp.float32)
    imf2 = jax.random.normal(keys[3], (5, 7, 32), dtype=jnp.float32)
    loss2 = jax.block_until_ready(symmetric_consistency_loss(tf2, imf2))
    ref2 = _reference_loss(tf2, imf2)
    assert jnp.allclose(loss2, ref2, atol=1e-5, rtol=1e-5), (loss2, ref2)

    # 2-D inputs (module skips the seq mean).
    tf3 = jax.random.normal(keys[4], (4, 64), dtype=jnp.float32)
    imf3 = jax.random.normal(keys[5], (4, 64), dtype=jnp.float32)
    loss3 = jax.block_until_ready(symmetric_consistency_loss(tf3, imf3))
    ref3 = _reference_loss(tf3, imf3)
    assert jnp.allclose(loss3, ref3, atol=1e-5, rtol=1e-5), (loss3, ref3)

    # Force the sequence-tiled path (partial last seq blocks, mismatched step
    # counts between the two inputs, clamped index map, in-kernel seq masks).
    tf4 = jax.random.normal(keys[6], (5, 12, 32), dtype=jnp.float32)
    imf4 = jax.random.normal(keys[7], (5, 20, 32), dtype=jnp.float32)
    loss4 = jax.block_until_ready(
        symmetric_consistency_loss(tf4, imf4, seq_block=8))
    ref4 = _reference_loss(tf4, imf4)
    assert jnp.allclose(loss4, ref4, atol=1e-5, rtol=1e-5), (loss4, ref4)

    print("KERNEL_OK")
</pallas_src>

<mosaic_0001>
module attributes {stable_mosaic.version = 11 : i64} {
  func.func @_sym_consistency_kernel(%arg0: i32, %arg1: i32, %arg2: memref<8x8x32xf32, #tpu.memory_space<vmem>>, %arg3: memref<8x8x32xf32, #tpu.memory_space<vmem>>, %arg4: memref<1x1x1xf32, #tpu.memory_space<vmem>>, %arg5: memref<8x32xf32, #tpu.memory_space<vmem>>, %arg6: memref<8x32xf32, #tpu.memory_space<vmem>>) attributes {dimension_semantics = [#tpu.dimension_semantics<parallel>, #tpu.dimension_semantics<arbitrary>], iteration_bounds = array<i64: 1, 1>, scalar_prefetch = 0 : i64, scratch_operands = 2 : i64, tpu.core_type = #tpu.core_type<tc>, window_params = [{transform_indices = @transform_0, window_bounds = array<i64: 8, 8, 32>}, {transform_indices = @transform_1, window_bounds = array<i64: 8, 8, 32>}, {transform_indices = @transform_2, window_bounds = array<i64: 1, 1, 1>}]} {
    %c0_i32 = arith.constant 0 : i32
    %0 = arith.cmpi eq, %arg1, %c0_i32 : i32
    %1 = arith.extui %0 : i1 to i32
    %c0_i32_0 = arith.constant 0 : i32
    %2 = arith.cmpi ne, %1, %c0_i32_0 : i32
    scf.if %2 {
      %cst_17 = arith.constant 0.000000e+00 : f32
      %16 = vector.broadcast %cst_17 : f32 to vector<8x32xf32>
      %c0_18 = arith.constant 0 : index
      %c0_19 = arith.constant 0 : index
      %17 = vector.load %arg5[%c0_18, %c0_19] : memref<8x32xf32, #tpu.memory_space<vmem>>, vector<8x32xf32>
      tpu.vector_store %arg5[%c0_18, %c0_19], %16 {strides = array<i32>} : memref<8x32xf32, #tpu.memory_space<vmem>>, vector<8x32xf32>,
      %cst_20 = arith.constant 0.000000e+00 : f32
      %18 = vector.broadcast %cst_20 : f32 to vector<8x32xf32>
      %c0_21 = arith.constant 0 : index
      %c0_22 = arith.constant 0 : index
      %19 = vector.load %arg6[%c0_21, %c0_22] : memref<8x32xf32, #tpu.memory_space<vmem>>, vector<8x32xf32>
      tpu.vector_store %arg6[%c0_21, %c0_22], %18 {strides = array<i32>} : memref<8x32xf32, #tpu.memory_space<vmem>>, vector<8x32xf32>,
    } else {
    }
    %c0 = arith.constant 0 : index
    %c0_1 = arith.constant 0 : index
    %c0_2 = arith.constant 0 : index
    %3 = vector.load %arg2[%c0, %c0_1, %c0_2] : memref<8x8x32xf32, #tpu.memory_space<vmem>>, vector<8x8x32xf32>
    %c0_3 = arith.constant 0 : index
    %c0_4 = arith.constant 0 : index
    %4 = vector.load %arg5[%c0_3, %c0_4] : memref<8x32xf32, #tpu.memory_space<vmem>>, vector<8x32xf32>
    %cst = arith.constant dense<0.000000e+00> : vector<8x32xf32>
    %5 = vector.multi_reduction <add>, %3, %cst [1] : vector<8x8x32xf32> to vector<8x32xf32>
    %6 = arith.addf %4, %5 : vector<8x32xf32>
    %c0_5 = arith.constant 0 : index
    %c0_6 = arith.constant 0 : index
    %7 = vector.load %arg5[%c0_5, %c0_6] : memref<8x32xf32, #tpu.memory_space<vmem>>, vector<8x32xf32>
    tpu.vector_store %arg5[%c0_5, %c0_6], %6 {strides = array<i32>} : memref<8x32xf32, #tpu.memory_space<vmem>>, vector<8x32xf32>,
    %c0_7 = arith.constant 0 : index
    %c0_8 = arith.constant 0 : index
    %c0_9 = arith.constant 0 : index
    %8 = vector.load %arg3[%c0_7, %c0_8, %c0_9] : memref<8x8x32xf32, #tpu.memory_space<vmem>>, vector<8x8x32xf32>
    %c0_10 = arith.constant 0 : index
    %c0_11 = arith.constant 0 : index
    %9 = vector.load %arg6[%c0_10, %c0_11] : memref<8x32xf32, #tpu.memory_space<vmem>>, vector<8x32xf32>
    %cst_12 = arith.constant dense<0.000000e+00> : vector<8x32xf32>
    %10 = vector.multi_reduction <add>, %8, %cst_12 [1] : vector<8x8x32xf32> to vector<8x32xf32>
    %11 = arith.addf %9, %10 : vector<8x32xf32>
    %c0_13 = arith.constant 0 : index
    %c0_14 = arith.constant 0 : index
    %12 = vector.load %arg6[%c0_13, %c0_14] : memref<8x32xf32, #tpu.memory_space<vmem>>, vector<8x32xf32>
    tpu.vector_store %arg6[%c0_13, %c0_14], %11 {strides = array<i32>} : memref<8x32xf32, #tpu.memory_space<vmem>>, vector<8x32xf32>,
    %c0_i32_15 = arith.constant 0 : i32
    %13 = arith.cmpi eq, %arg1, %c0_i32_15 : i32
    %14 = arith.extui %13 : i1 to i32
    %c0_i32_16 = arith.constant 0 : i32
    %15 = arith.cmpi ne, %14, %c0_i32_16 : i32
    scf.if %15 {
      %c0_17 = arith.constant 0 : index
      %c0_18 = arith.constant 0 : index
      %16 = vector.load %arg5[%c0_17, %c0_18] : memref<8x32xf32, #tpu.memory_space<vmem>>, vector<8x32xf32>
      %c0_19 = arith.constant 0 : index
      %c0_20 = arith.constant 0 : index
      %17 = vector.load %arg6[%c0_19, %c0_20] : memref<8x32xf32, #tpu.memory_space<vmem>>, vector<8x32xf32>
      %18 = arith.mulf %16, %17 : vector<8x32xf32>
      %cst_21 = arith.constant dense<0.000000e+00> : vector<8xf32>
      %19 = vector.multi_reduction <add>, %18, %cst_21 [1] : vector<8x32xf32> to vector<8xf32>
      %20 = vector.shape_cast %19 : vector<8xf32> to vector<8x1xf32>
      %21 = arith.mulf %16, %16 : vector<8x32xf32>
      %cst_22 = arith.constant dense<0.000000e+00> : vector<8xf32>
      %22 = vector.multi_reduction <add>, %21, %cst_22 [1] : vector<8x32xf32> to vector<8xf32>
      %23 = vector.shape_cast %22 : vector<8xf32> to vector<8x1xf32>
      %24 = arith.mulf %17, %17 : vector<8x32xf32>
      %cst_23 = arith.constant dense<0.000000e+00> : vector<8xf32>
      %25 = vector.multi_reduction <add>, %24, %cst_23 [1] : vector<8x32xf32> to vector<8xf32>
      %26 = vector.shape_cast %25 : vector<8xf32> to vector<8x1xf32>
      %cst_24 = arith.constant 6.400000e-23 : f32
      %27 = vector.broadcast %cst_24 : f32 to vector<8x1xf32>
      %28 = arith.maximumf %23, %27 : vector<8x1xf32>
      %29 = math.rsqrt %28 : vector<8x1xf32>
      %cst_25 = arith.constant 6.400000e-23 : f32
      %30 = vector.broadcast %cst_25 : f32 to vector<8x1xf32>
      %31 = arith.maximumf %26, %30 : vector<8x1xf32>
      %32 = math.rsqrt %31 : vector<8x1xf32>
      %33 = arith.mulf %29, %32 : vector<8x1xf32>
      %34 = arith.mulf %20, %33 : vector<8x1xf32>
      %c8_i32 = arith.constant 8 : i32
      %35 = arith.muli %arg0, %c8_i32 : i32
      %36 = tpu.iota {dimensions = array<i32: 0>} : vector<8x1xi32>
      %37 = vector.broadcast %35 : i32 to vector<8x1xi32>
      %38 = arith.addi %37, %36 : vector<8x1xi32>
      %c2_i32 = arith.constant 2 : i32
      %39 = vector.broadcast %c2_i32 : i32 to vector<8x1xi32>
      %40 = arith.cmpi slt, %38, %39 : vector<8x1xi32>
      %cst_26 = arith.constant 0.000000e+00 : f32
      %41 = vector.broadcast %cst_26 : f32 to vector<8x1xf32>
      %42 = arith.select %40, %34, %41 : vector<8x1xi1>, vector<8x1xf32>
      %cst_27 = arith.constant dense<0.000000e+00> : vector<1xf32>
      %43 = vector.multi_reduction <add>, %42, %cst_27 [0] : vector<8x1xf32> to vector<1xf32>
      %44 = vector.shape_cast %43 : vector<1xf32> to vector<1x1xf32>
      %c0_28 = arith.constant 0 : index
      %c0_29 = arith.constant 0 : index
      %c0_30 = arith.constant 0 : index
      %45 = vector.load %arg4[%c0_28, %c0_29, %c0_30] : memref<1x1x1xf32, #tpu.memory_space<vmem>>, vector<1x1x1xf32>
      %46 = vector.shape_cast %45 : vector<1x1x1xf32> to vector<1x1xf32>
      %47 = vector.shape_cast %44 : vector<1x1xf32> to vector<1x1x1xf32>
      tpu.vector_store %arg4[%c0_28, %c0_29, %c0_30], %47 {strides = array<i32>} : memref<1x1x1xf32, #tpu.memory_space<vmem>>, vector<1x1x1xf32>,
    } else {
    }
    return
  }
  func.func @transform_0(%arg0: i32, %arg1: i32) -> (i32, i32, i32) {
    %c0_i32 = arith.constant 0 : i32
    %c0_i32_0 = arith.constant 0 : i32
    return %arg0, %arg1, %c0_i32 : i32, i32, i32
  }
  func.func @transform_1(%arg0: i32, %arg1: i32) -> (i32, i32, i32) {
    %c0_i32 = arith.constant 0 : i32
    %c0_i32_0 = arith.constant 0 : i32
    return %arg0, %arg1, %c0_i32 : i32, i32, i32
  }
  func.func @transform_2(%arg0: i32, %arg1: i32) -> (i32, i32, i32) {
    %c0_i32 = arith.constant 0 : i32
    %c0_i32_0 = arith.constant 0 : i32
    %c0_i32_1 = arith.constant 0 : i32
    return %arg0, %c0_i32, %c0_i32_0 : i32, i32, i32
  }
}

</mosaic_0001>

<llo_original>
// kernel: tpu_custom_call.1
$region0: #{tpu_custom_call.1}
  #allocation0 [shape = 'u32[]', space=smem, size = 0x4, offset = 0x4, fixed_abs, tag = 'smem constant byte address 0x4 - core index']
  #allocation1 [shape = 'u32[72,128]{1,0:T(1,128)}', space=vmem, size = 0x9000, scoped, tag = 'internal scratch']
  #allocation2 [shape = 'f32[8,32]{1,0:T(8,128)}', space=vmem, size = 0x1000, scoped, tag = 'scratch operand']
  #allocation3 [shape = 'f32[8,32]{1,0:T(8,128)}', space=vmem, size = 0x1000, scoped, tag = 'scratch operand']
  %s0 = inlined_call_operand.hbm [shape: f32[2,8,32], index: 0, kind: input, shape index: {}]
  %s1 = inlined_call_operand.hbm [shape: f32[2,8,32], index: 1, kind: input, shape index: {}]
  %s2 = inlined_call_operand.hbm [shape: f32[1,1,1], index: 2, kind: output, shape index: {}]
  %s3 = sld [smem:[#allocation0]]
  $region34: #{tpu_custom_call.1} parent=0
    _
  %s5 = ssub.s32 1, %s3
  %s6 = scalar_select 0, %s5, %s3
  $region1: #{tpu_custom_call.1} parent=0
    #allocation4 [shape = 'u8[32768]{0}', space=vmem, size = 0x8000, scoped, tag = 'input window, operand 0, single buffered']
    #allocation5 [shape = 's32[1]{0}', space=sflag, size = 0x4, scoped, tag = 'scoped memory for tpu_custom_call.1']
    #allocation6 [shape = 's32[1]{0}', space=sflag, size = 0x4, scoped, tag = 'scoped memory for tpu_custom_call.1']
    #allocation7 [shape = 'u8[32768]{0}', space=vmem, size = 0x8000, scoped, tag = 'input window, operand 1, single buffered']
    #allocation8 [shape = 's32[1]{0}', space=sflag, size = 0x4, scoped, tag = 'scoped memory for tpu_custom_call.1']
    #allocation9 [shape = 'u8[512]{0}', space=vmem, size = 0x400, scoped, tag = 'output window, operand 0, single buffered']
    %7 = vsyncpa [#allocation5], 0
    %8 = vsyncpa [#allocation8], 0
    %9 = vsyncpa [#allocation6], 0
    // Predicated region
    $region2: #{tpu_custom_call.1} parent=1 // pred_check
      _
    $region3: #{tpu_custom_call.1} parent=1 // pred_check_branch
      %11 = sbr.rel (0) target = $region5
    $region4: #{tpu_custom_call.1} parent=1 // pred_region
      %13 = vsyncadd [#allocation5], 768
      %s14 = sshll.u32 %s0, 4
      %s15 = int_to_ptr.hbm [resolvable:$true] %s14
      %s16 = sshll.u32 [#allocation4], 4
      %s17 = int_to_ptr.vmem [resolvable:$true] %s16
      %22 = dma.hbm_to_vmem [thread:$0]  %s15, 256, %s17, [#allocation5], 128, 128, 8
    $region5: #{tpu_custom_call.1} parent=1 // pred_fallthru
      _
    // Predicated region
    $region6: #{tpu_custom_call.1} parent=1 // pred_check
      _
    $region7: #{tpu_custom_call.1} parent=1 // pred_check_branch
      %24 = sbr.rel (0) target = $region9
    $region8: #{tpu_custom_call.1} parent=1 // pred_region
      %26 = vsyncadd [#allocation8], 768
      %s27 = sshll.u32 %s1, 4
      %s28 = int_to_ptr.hbm [resolvable:$true] %s27
      %s29 = sshll.u32 [#allocation7], 4
      %s30 = int_to_ptr.vmem [resolvable:$true] %s29
      %35 = dma.hbm_to_vmem [thread:$0]  %s28, 256, %s30, [#allocation8], 128, 128, 8
    $region9: #{tpu_custom_call.1} parent=1 // pred_fallthru
      _
    // Predicated region
    $region10: #{tpu_custom_call.1} parent=1 // pred_check
      _
    $region11: #{tpu_custom_call.1} parent=1 // pred_check_branch
      %37 = sbr.rel (0) target = $region13
    $region12: #{tpu_custom_call.1} parent=1 // pred_region
      %39 = dma.done [#allocation5], 1024
    $region13: #{tpu_custom_call.1} parent=1 // pred_fallthru
      _
    // Predicated region
    $region14: #{tpu_custom_call.1} parent=1 // pred_check
      _
    $region15: #{tpu_custom_call.1} parent=1 // pred_check_branch
      %41 = sbr.rel (0) target = $region17
    $region16: #{tpu_custom_call.1} parent=1 // pred_region
      %43 = dma.done [#allocation8], 1024
    $region17: #{tpu_custom_call.1} parent=1 // pred_fallthru
      _
    %p44 = scmp.eq.s32.totalorder 0, 0
    // Predicated region
    $region18: #{tpu_custom_call.1} parent=1 // pred_check
      %p45 = pneg %p44
    $region19: #{tpu_custom_call.1} parent=1 // pred_check_branch
      %47 = sbr.rel (%p45) target = $region21
    $region20: #{tpu_custom_call.1} parent=1 // pred_region
      %vm48 = vcmask 261120
      %49 = vst.msk [vmem:[#allocation2] sm:$0xff] %vm48, 0.0
      %50 = vst.msk [vmem:[#allocation3] sm:$0xff] %vm48, 0.0
    $region21: #{tpu_custom_call.1} parent=1 // pred_fallthru
      _
    %v51 = vld [vmem:[#allocation4] sm:$0xff]
    %v52 = vld [vmem:[#allocation4 + $0x8] sm:$0xff]
    %v53 = vld [vmem:[#allocation4 + $0x10] sm:$0xff]
    %v54 = vld [vmem:[#allocation4 + $0x18] sm:$0xff]
    %v55 = vld [vmem:[#allocation4 + $0x20] sm:$0xff]
    %v56 = vld [vmem:[#allocation4 + $0x28] sm:$0xff]
    %v57 = vld [vmem:[#allocation4 + $0x30] sm:$0xff]
    %v58 = vld [vmem:[#allocation4 + $0x38] sm:$0xff]
    %v59 = vld [vmem:[#allocation2] sm:$0xff]
    %vm60 = vcmask 261120
    %v61 = vsel %vm60, %v51, 0.0
    %v62 = vrot.slane %v61, 4
    %v63 = vadd.f32 %v61, %v62
    %v64 = vrot.slane %v63, 2
    %v65 = vadd.f32 %v63, %v64
    %v66 = vrot.slane %v65, 1
    %v67 = vadd.f32 %v65, %v66
    %v68 = vsel %vm60, %v52, 0.0
    %v69 = vrot.slane %v68, 4
    %v70 = vadd.f32 %v68, %v69
    %v71 = vrot.slane %v70, 2
    %v72 = vadd.f32 %v70, %v71
    %v73 = vrot.slane %v72, 1
    %v74 = vadd.f32 %v72, %v73
    %v75 = vsel %vm60, %v53, 0.0
    %v76 = vrot.slane %v75, 4
    %v77 = vadd.f32 %v75, %v76
    %v78 = vrot.slane %v77, 2
    %v79 = vadd.f32 %v77, %v78
    %v80 = vrot.slane %v79, 1
    %v81 = vadd.f32 %v79, %v80
    %v82 = vsel %vm60, %v54, 0.0
    %v83 = vrot.slane %v82, 4
    %v84 = vadd.f32 %v82, %v83
    %v85 = vrot.slane %v84, 2
    %v86 = vadd.f32 %v84, %v85
    %v87 = vrot.slane %v86, 1
    %v88 = vadd.f32 %v86, %v87
    %v89 = vsel %vm60, %v55, 0.0
    %v90 = vrot.slane %v89, 4
    %v91 = vadd.f32 %v89, %v90
    %v92 = vrot.slane %v91, 2
    %v93 = vadd.f32 %v91, %v92
    %v94 = vrot.slane %v93, 1
    %v95 = vadd.f32 %v93, %v94
    %v96 = vsel %vm60, %v56, 0.0
    %v97 = vrot.slane %v96, 4
    %v98 = vadd.f32 %v96, %v97
    %v99 = vrot.slane %v98, 2
    %v100 = vadd.f32 %v98, %v99
    %v101 = vrot.slane %v100, 1
    %v102 = vadd.f32 %v100, %v101
    %v103 = vsel %vm60, %v57, 0.0
    %v104 = vrot.slane %v103, 4
    %v105 = vadd.f32 %v103, %v104
    %v106 = vrot.slane %v105, 2
    %v107 = vadd.f32 %v105, %v106
    %v108 = vrot.slane %v107, 1
    %v109 = vadd.f32 %v107, %v108
    %v110 = vsel %vm60, %v58, 0.0
    %v111 = vrot.slane %v110, 4
    %v112 = vadd.f32 %v110, %v111
    %v113 = vrot.slane %v112, 2
    %v114 = vadd.f32 %v112, %v113
    %v115 = vrot.slane %v114, 1
    %v116 = vadd.f32 %v114, %v115
    %vm125 = vcmask 1041409
    %v126 = vsel %vm125, %v74, %v67
    %vm127 = vcmask 1042434
    %v128 = vsel %vm127, %v81, %v126
    %vm129 = vcmask 1043459
    %v130 = vsel %vm129, %v88, %v128
    %vm131 = vcmask 1044484
    %v132 = vsel %vm131, %v95, %v130
    %vm133 = vcmask 1045509
    %v134 = vsel %vm133, %v102, %v132
    %vm135 = vcmask 1046534
    %v136 = vsel %vm135, %v109, %v134
    %vm137 = vcmask 1047559
    %v138 = vsel %vm137, %v116, %v136
    %v140 = vadd.f32 %v59, %v138
    %141 = vst.msk [vmem:[#allocation2] sm:$0xff] %vm60, %v140
    %v142 = vld [vmem:[#allocation7] sm:$0xff]
    %v143 = vld [vmem:[#allocation7 + $0x8] sm:$0xff]
    %v144 = vld [vmem:[#allocation7 + $0x10] sm:$0xff]
    %v145 = vld [vmem:[#allocation7 + $0x18] sm:$0xff]
    %v146 = vld [vmem:[#allocation7 + $0x20] sm:$0xff]
    %v147 = vld [vmem:[#allocation7 + $0x28] sm:$0xff]
    %v148 = vld [vmem:[#allocation7 + $0x30] sm:$0xff]
    %v149 = vld [vmem:[#allocation7 + $0x38] sm:$0xff]
    %v150 = vld [vmem:[#allocation3] sm:$0xff]
    %v151 = vsel %vm60, %v142, 0.0
    %v152 = vrot.slane %v151, 4
    %v153 = vadd.f32 %v151, %v152
    %v154 = vrot.slane %v153, 2
    %v155 = vadd.f32 %v153, %v154
    %v156 = vrot.slane %v155, 1
    %v157 = vadd.f32 %v155, %v156
    %v158 = vsel %vm60, %v143, 0.0
    %v159 = vrot.slane %v158, 4
    %v160 = vadd.f32 %v158, %v159
    %v161 = vrot.slane %v160, 2
    %v162 = vadd.f32 %v160, %v161
    %v163 = vrot.slane %v162, 1
    %v164 = vadd.f32 %v162, %v163
    %v165 = vsel %vm60, %v144, 0.0
    %v166 = vrot.slane %v165, 4
    %v167 = vadd.f32 %v165, %v166
    %v168 = vrot.slane %v167, 2
    %v169 = vadd.f32 %v167, %v168
    %v170 = vrot.slane %v169, 1
    %v171 = vadd.f32 %v169, %v170
    %v172 = vsel %vm60, %v145, 0.0
    %v173 = vrot.slane %v172, 4
    %v174 = vadd.f32 %v172, %v173
    %v175 = vrot.slane %v174, 2
    %v176 = vadd.f32 %v174, %v175
    %v177 = vrot.slane %v176, 1
    %v178 = vadd.f32 %v176, %v177
    %v179 = vsel %vm60, %v146, 0.0
    %v180 = vrot.slane %v179, 4
    %v181 = vadd.f32 %v179, %v180
    %v182 = vrot.slane %v181, 2
    %v183 = vadd.f32 %v181, %v182
    %v184 = vrot.slane %v183, 1
    %v185 = vadd.f32 %v183, %v184
    %v186 = vsel %vm60, %v147, 0.0
    %v187 = vrot.slane %v186, 4
    %v188 = vadd.f32 %v186, %v187
    %v189 = vrot.slane %v188, 2
    %v190 = vadd.f32 %v188, %v189
    %v191 = vrot.slane %v190, 1
    %v192 = vadd.f32 %v190, %v191
    %v193 = vsel %vm60, %v148, 0.0
    %v194 = vrot.slane %v193, 4
    %v195 = vadd.f32 %v193, %v194
    %v196 = vrot.slane %v195, 2
    %v197 = vadd.f32 %v195, %v196
    %v198 = vrot.slane %v197, 1
    %v199 = vadd.f32 %v197, %v198
    %v200 = vsel %vm60, %v149, 0.0
    %v201 = vrot.slane %v200, 4
    %v202 = vadd.f32 %v200, %v201
    %v203 = vrot.slane %v202, 2
    %v204 = vadd.f32 %v202, %v203
    %v205 = vrot.slane %v204, 1
    %v206 = vadd.f32 %v204, %v205
    %v215 = vsel %vm125, %v164, %v157
    %v216 = vsel %vm127, %v171, %v215
    %v217 = vsel %vm129, %v178, %v216
    %v218 = vsel %vm131, %v185, %v217
    %v219 = vsel %vm133, %v192, %v218
    %v220 = vsel %vm135, %v199, %v219
    %v221 = vsel %vm137, %v206, %v220
    %v223 = vadd.f32 %v150, %v221
    %224 = vst.msk [vmem:[#allocation3] sm:$0xff] %vm60, %v223
    // Predicated region
    $region22: #{tpu_custom_call.1} parent=1 // pred_check
      %p225 = pneg %p44
    $region23: #{tpu_custom_call.1} parent=1 // pred_check_branch
      %227 = sbr.rel (%p225) target = $region25
    $region24: #{tpu_custom_call.1} parent=1 // pred_region
      %v228 = vld [vmem:[#allocation2] sm:$0xff]
      %v229 = vld [vmem:[#allocation3] sm:$0xff]
      %v230 = vmul.f32 %v228, %v229
      %v231 = vsel %vm60, %v230, 0.0
      %232 = vadd.xlane.f32.xlu0 %v231
      %v233 = vpop.xlane.xlu0 %232
      %v234 = vmul.f32 %v228, %v228
      %v235 = vsel %vm60, %v234, 0.0
      %236 = vadd.xlane.f32.xlu0 %v235
      %v237 = vpop.xlane.xlu0 %236
      %v238 = vmul.f32 %v229, %v229
      %v239 = vsel %vm60, %v238, 0.0
      %240 = vadd.xlane.f32.xlu0 %v239
      %v241 = vpop.xlane.xlu0 %240
      %v242 = vmax.f32 %v237, 6.4e-23
      %v243 = vrsqrt.pop %v242
      %v244 = vmul.f32 %v243, %v242
      %v245 = vmul.f32 %v244, %v243
      %v246 = vmul.f32 0.5, %v245
      %v247 = vsub.f32 1.5, %v246
      %v248 = vmul.f32 %v243, %v247
      %vm249 = vweird.f32 %v242
      %vm250 = vweird.f32 %v243
      %vm251 = vmor %vm249, %vm250
      %v252 = vsel %vm251, %v243, %v248
      %v253 = vmax.f32 %v241, 6.4e-23
      %v254 = vrsqrt.pop %v253
      %v255 = vmul.f32 %v254, %v253
      %v256 = vmul.f32 %v255, %v254
      %v257 = vmul.f32 0.5, %v256
      %v258 = vsub.f32 1.5, %v257
      %v259 = vmul.f32 %v254, %v258
      %vm260 = vweird.f32 %v253
      %vm261 = vweird.f32 %v254
      %vm262 = vmor %vm260, %vm261
      %v263 = vsel %vm262, %v254, %v259
      %v264 = vmul.f32 %v252, %v263
      %v265 = vmul.f32 %v233, %v264
      %s266 = smul.u32 0, 8
      %v267 = vlaneseq
      %v268 = vshrl.u32 %v267, 7
      %v269 = vstv %s266
      %v270 = vadd.s32 %v269, %v268
      %vm271 = vcmp.lt.s32.totalorder %v270, 2
      %v272 = vsel %vm271, %v265, 0.0
      %v273 = vrot.slane %v272, 4
      %v274 = vadd.f32 %v272, %v273
      %v275 = vrot.slane %v274, 2
      %v276 = vadd.f32 %v274, %v275
      %v277 = vrot.slane %v276, 1
      %v278 = vadd.f32 %v276, %v277
      %vm279 = vcmask 0
      %280 = vst.msk [vmem:[#allocation9] sm:$0x1] %vm279, %v278
    $region25: #{tpu_custom_call.1} parent=1 // pred_fallthru
      _
    // Predicated region
    $region26: #{tpu_custom_call.1} parent=1 // pred_check
      _
    $region27: #{tpu_custom_call.1} parent=1 // pred_check_branch
      %282 = sbr.rel (0) target = $region29
    $region28: #{tpu_custom_call.1} parent=1 // pred_region
      %284 = vsyncadd [#allocation6], 0
      %s286 = sshll.u32 [#allocation9], 4
      %s287 = int_to_ptr.vmem [resolvable:$true] %s286
      %s288 = sshll.u32 %s2, 4
      %s289 = int_to_ptr.hbm [resolvable:$true] %s288
      %291 = dma.vmem_to_hbm [thread:$0]  %s287, 16, %s289, [#allocation6]
    $region29: #{tpu_custom_call.1} parent=1 // pred_fallthru
      _
    // Predicated region
    $region30: #{tpu_custom_call.1} parent=1 // pred_check
      _
    $region31: #{tpu_custom_call.1} parent=1 // pred_check_branch
      %293 = sbr.rel (0) target = $region33
    $region32: #{tpu_custom_call.1} parent=1 // pred_region
      %295 = dma.done [#allocation6], 16
    $region33: #{tpu_custom_call.1} parent=1 // pred_fallthru
      _
    %296 = vsyncpa [#allocation5], 1
    %297 = vsyncpa [#allocation8], 1
    %298 = vsyncpa [#allocation6], 1

</llo_original>
